<compile_context>
chip_gen: v5e
topology: v5e:2x2
jax: 0.10.0
libtpu: 0.0.40
codegen_flags: <defaults>
</compile_context>

<pallas_src>
import jax
import jax.numpy as jnp
from jax.experimental import pallas as pl
from jax.experimental.pallas import tpu as pltpu


def _round_up(x, m):
    return (x + m - 1) // m * m


# ---------------------------------------------------------------------------
# Weight preparation (run ONCE at weight-load time, not per forward call).
# ---------------------------------------------------------------------------
def prepare_glm_mlp_weights(w_h_to_4h, w_4h_to_h, *, tn=512):
    """Split + pad + re-tile the GLMMLP weights for the streaming kernel.

    w_h_to_4h: [H, 2*FFN]  merged (gate | up) projection, pre-transposed from
               PyTorch's (out, in) layout so the kernel does x @ W.
    w_4h_to_h: [FFN, H]    down projection, likewise pre-transposed.
    tn:        FFN tile width (multiple of 128; 512 fills the 256-wide MXUs
               on v6e/v7x and amortizes the f32 accumulator RMW).

    Returns (w_gu, w_down, tn) where
      w_gu:   [H, 2*FFN_pad]  block k (width 2*tn) holds [gate_k | up_k]
      w_down: [FFN_pad, H]
    with FFN_pad = round_up(FFN, tn).  Padding is zeros and numerically exact.
    """
    assert tn % 128 == 0, "tn must be a multiple of the 128-wide lane dim"
    H, two_ffn = w_h_to_4h.shape
    ffn = two_ffn // 2
    assert w_4h_to_h.shape == (ffn, H)

    ffn_pad = _round_up(ffn, tn)
    w_gate = w_h_to_4h[:, :ffn]
    w_up = w_h_to_4h[:, ffn:]
    if ffn_pad != ffn:
        pad = ffn_pad - ffn
        w_gate = jnp.pad(w_gate, ((0, 0), (0, pad)))
        w_up = jnp.pad(w_up, ((0, 0), (0, pad)))
        w_down = jnp.pad(w_4h_to_h, ((0, pad), (0, 0)))
    else:
        w_down = w_4h_to_h

    nk = ffn_pad // tn
    # Interleave gate/up column tiles: block k = [gate_k | up_k] so the
    # kernel's first stage is one (tm, H) x (H, 2*tn) matmul per step.
    w_gu = jnp.concatenate(
        [w_gate.reshape(H, nk, tn), w_up.reshape(H, nk, tn)], axis=-1
    ).reshape(H, 2 * ffn_pad)
    return w_gu, w_down, tn


# ---------------------------------------------------------------------------
# Kernel
# ---------------------------------------------------------------------------
def _glm_mlp_kernel(x_ref, wgu_ref, wd_ref, o_ref, acc_ref):
    # x_ref:   (tm, H)     token tile, resident across the FFN reduction axis
    # wgu_ref: (H, 2*tn)   fused [gate_k | up_k] weight column tile (streamed)
    # wd_ref:  (tn, H)     down-projection row tile (streamed)
    # o_ref:   (tm, H)     output tile, resident across the reduction axis
    # acc_ref: (tm, H)     f32 accumulator scratch
    k = pl.program_id(1)
    tn = wd_ref.shape[0]

    @pl.when(k == 0)
    def _init():
        acc_ref[...] = jnp.zeros_like(acc_ref)

    x = x_ref[...]  # native (bf16) dtype -> MXU fast path
    gu = jnp.dot(x, wgu_ref[...], preferred_element_type=jnp.float32)  # (tm, 2*tn) f32
    gate = gu[:, :tn]          # lane-aligned slices (tn is a multiple of 128)
    up = gu[:, tn:]

    # silu(gate) * up in f32; the divide rides the approx EUP path (free slot
    # once the kernel is MXU-bound).  Cast back to the weight dtype so the
    # down-projection stays on the bf16 MXU path.
    act = gate * pl.reciprocal(1.0 + jnp.exp(-gate), approx=True) * up
    act = act.astype(wd_ref.dtype)

    acc_ref[...] += jnp.dot(act, wd_ref[...], preferred_element_type=jnp.float32)

    @pl.when(k == pl.num_programs(1) - 1)
    def _finalize():
        o_ref[...] = acc_ref[...].astype(o_ref.dtype)


# ---------------------------------------------------------------------------
# Wrapper
# ---------------------------------------------------------------------------
def _vmem_capacity_bytes():
    try:
        cap = getattr(pltpu.get_tpu_info(), "vmem_capacity_bytes", None)
        if cap:
            return int(cap)
    except Exception:
        pass
    return 64 << 20  # conservative fallback: v7x has 64 MiB per TensorCore


def _pick_tm(T, H, tn, act_bytes, w_bytes, vmem_budget):
    """Largest token-tile height whose (conservatively double-buffered)
    working set fits the VMEM budget; capped by the (8-aligned) token count."""
    chosen = 8
    for tm in (1024, 768, 512, 384, 256, 128, 64, 32, 16, 8):
        need = (
            2 * tm * H * act_bytes         # x tile (resident; counted x2 anyway)
            + 2 * tm * H * act_bytes       # out tile, double-buffered
            + tm * H * 4                   # f32 accumulator scratch
            + 2 * H * (2 * tn) * w_bytes   # fused gate|up tile, double-buffered
            + 2 * tn * H * w_bytes         # down-proj tile, double-buffered
        )
        if need <= vmem_budget:
            chosen = tm
            break
    return min(chosen, _round_up(max(T, 1), 8))


def glm_mlp(hidden_states, w_gu, w_down, *, tn, tm=None):
    """ChatGLM MLP forward with weights prepared by prepare_glm_mlp_weights.

    hidden_states: [T, H]
    w_gu:          [H, 2*FFN_pad]  interleaved [gate_k | up_k] blocks (width 2*tn)
    w_down:        [FFN_pad, H]
    Returns [T, H] in hidden_states.dtype.
    """
    T, H = hidden_states.shape
    ffn_pad, H2 = w_down.shape
    assert H2 == H and w_gu.shape == (H, 2 * ffn_pad)
    assert ffn_pad % tn == 0

    act_bytes = jnp.dtype(hidden_states.dtype).itemsize
    w_bytes = jnp.dtype(w_gu.dtype).itemsize

    vmem_budget = int(_vmem_capacity_bytes() * 0.75)
    if tm is None:
        tm = _pick_tm(T, H, tn, act_bytes, w_bytes, vmem_budget)
    tm = _round_up(tm, 8)

    # Pad ragged token counts instead of asserting.
    T_pad = _round_up(T, tm)
    if T_pad != T:
        x_p = jnp.zeros((T_pad, H), hidden_states.dtype).at[:T].set(hidden_states)
    else:
        x_p = hidden_states

    n_tok_tiles = T_pad // tm
    n_k = ffn_pad // tn
    grid = (n_tok_tiles, n_k)  # token axis parallel, FFN reduction last

    cost = pl.CostEstimate(
        # 2*T*H*(2*FFN) fused gate/up matmul + 2*T*FFN*H down-proj = 6*T*H*FFN
        flops=6 * T_pad * H * ffn_pad,
        transcendentals=T_pad * ffn_pad,  # exp in silu
        bytes_accessed=(
            2 * T_pad * H * act_bytes                             # x read + out write
            + n_tok_tiles * (w_gu.size + w_down.size) * w_bytes   # weights re-streamed per token tile
        ),
    )

    out = pl.pallas_call(
        _glm_mlp_kernel,
        out_shape=jax.ShapeDtypeStruct((T_pad, H), hidden_states.dtype),
        grid_spec=pltpu.PrefetchScalarGridSpec(
            num_scalar_prefetch=0,
            grid=grid,
            in_specs=[
                pl.BlockSpec((tm, H), lambda i, k: (i, 0)),       # x (resident over k)
                pl.BlockSpec((H, 2 * tn), lambda i, k: (0, k)),   # fused gate|up column tile
                pl.BlockSpec((tn, H), lambda i, k: (k, 0)),       # down-proj row tile
            ],
            out_specs=pl.BlockSpec((tm, H), lambda i, k: (i, 0)),
            scratch_shapes=[pltpu.VMEM((tm, H), jnp.float32)],
        ),
        compiler_params=pltpu.CompilerParams(
            dimension_semantics=("parallel", "arbitrary"),
            vmem_limit_bytes=vmem_budget,
        ),
        cost_estimate=cost,
    )(x_p, w_gu, w_down)

    return out[:T] if T_pad != T else out


# ---------------------------------------------------------------------------
# Reference + demo
# ---------------------------------------------------------------------------
def glm_mlp_reference(hidden_states, w_h_to_4h, w_4h_to_h):
    x = hidden_states.astype(jnp.float32)
    inter = jnp.dot(x, w_h_to_4h.astype(jnp.float32))
    ffn = w_4h_to_h.shape[0]
    gate, up = inter[:, :ffn], inter[:, ffn:]
    act = jax.nn.silu(gate) * up
    out = jnp.dot(act, w_4h_to_h.astype(jnp.float32))
    return out.astype(hidden_states.dtype)


if __name__ == "__main__":
    # Small config consistent with GLMMLP: hidden_size=128, ffn_hidden_size=300
    # (deliberately NOT a multiple of 128/512, exercising the FFN zero-padding
    # path), num_tokens=24 (exercises token padding), add_bias_linear=False,
    # bf16 weights/activations.
    T, H, FFN = 24, 128, 300
    dtype = jnp.bfloat16

    key = jax.random.PRNGKey(0)
    kx, k1, k2 = jax.random.split(key, 3)

    x = jax.random.normal(kx, (T, H), dtype=jnp.float32).astype(dtype)
    # dense_h_to_4h: MergedColumnParallelLinear(H, [FFN, FFN]) weight, stored
    # pre-transposed as (H, 2*FFN).
    w_h_to_4h = (jax.random.normal(k1, (H, 2 * FFN), dtype=jnp.float32) * 0.05).astype(dtype)
    # dense_4h_to_h: RowParallelLinear(FFN, H) weight, stored (FFN, H).
    w_4h_to_h = (jax.random.normal(k2, (FFN, H), dtype=jnp.float32) * 0.05).astype(dtype)

    ref = glm_mlp_reference(x, w_h_to_4h, w_4h_to_h)

    # tn=128 exercises the multi-step reduction / f32-accumulator path;
    # tn=512 (the production default for ChatGLM's FFN=13696 -> 13824)
    # exercises the pad-to-a-single-big-tile path.
    for tn in (128, 512):
        w_gu, w_down, tn_used = prepare_glm_mlp_weights(w_h_to_4h, w_4h_to_h, tn=tn)
        out = glm_mlp(x, w_gu, w_down, tn=tn_used)
        out = jax.block_until_ready(out)
        assert out.shape == (T, H)
        err = jnp.max(jnp.abs(out.astype(jnp.float32) - ref.astype(jnp.float32)))
        assert err < 4e-2, f"tn={tn}: max abs err {err}"
    print("KERNEL_OK")
</pallas_src>

<mosaic_0001>
module attributes {stable_mosaic.version = 11 : i64} {
  func.func @_glm_mlp_kernel(%arg0: i32, %arg1: i32, %arg2: memref<24x128xbf16, #tpu.memory_space<vmem>>, %arg3: memref<128x256xbf16, #tpu.memory_space<vmem>>, %arg4: memref<128x128xbf16, #tpu.memory_space<vmem>>, %arg5: memref<24x128xbf16, #tpu.memory_space<vmem>>, %arg6: memref<24x128xf32, #tpu.memory_space<vmem>>) attributes {dimension_semantics = [#tpu.dimension_semantics<parallel>, #tpu.dimension_semantics<arbitrary>], iteration_bounds = array<i64: 1, 3>, scalar_prefetch = 0 : i64, scratch_operands = 1 : i64, tpu.core_type = #tpu.core_type<tc>, window_params = [{transform_indices = @transform_0, window_bounds = array<i64: 24, 128>}, {transform_indices = @transform_1, window_bounds = array<i64: 128, 256>}, {transform_indices = @transform_2, window_bounds = array<i64: 128, 128>}, {transform_indices = @transform_3, window_bounds = array<i64: 24, 128>}]} {
    %c0_i32 = arith.constant 0 : i32
    %0 = arith.cmpi eq, %arg1, %c0_i32 : i32
    %1 = arith.extui %0 : i1 to i32
    %c0_i32_0 = arith.constant 0 : i32
    %2 = arith.cmpi ne, %1, %c0_i32_0 : i32
    scf.if %2 {
      %cst_14 = arith.constant 0.000000e+00 : f32
      %25 = vector.broadcast %cst_14 : f32 to vector<24x128xf32>
      %c0_15 = arith.constant 0 : index
      %c0_16 = arith.constant 0 : index
      %26 = vector.load %arg6[%c0_15, %c0_16] : memref<24x128xf32, #tpu.memory_space<vmem>>, vector<24x128xf32>
      tpu.vector_store %arg6[%c0_15, %c0_16], %25 {strides = array<i32>} : memref<24x128xf32, #tpu.memory_space<vmem>>, vector<24x128xf32>,
    } else {
    }
    %c0 = arith.constant 0 : index
    %c0_1 = arith.constant 0 : index
    %3 = vector.load %arg2[%c0, %c0_1] : memref<24x128xbf16, #tpu.memory_space<vmem>>, vector<24x128xbf16>
    %c0_2 = arith.constant 0 : index
    %c0_3 = arith.constant 0 : index
    %4 = vector.load %arg3[%c0_2, %c0_3] : memref<128x256xbf16, #tpu.memory_space<vmem>>, vector<128x256xbf16>
    %cst = arith.constant dense<0.000000e+00> : vector<24x256xf32>
    %5 = tpu.matmul %3, %4, %cst {dimension_numbers = #tpu.dot_dimension_numbers<[1], [0], [0], [1], [0, 0, 1, 1], [], []>} : vector<24x128xbf16>, vector<128x256xbf16>, vector<24x256xf32> -> vector<24x256xf32>
    %6 = vector.extract_strided_slice %5 {offsets = [0, 0], sizes = [24, 128], strides = [1, 1]} : vector<24x256xf32> to vector<24x128xf32>
    %7 = vector.extract_strided_slice %5 {offsets = [0, 128], sizes = [24, 128], strides = [1, 1]} : vector<24x256xf32> to vector<24x128xf32>
    %cst_4 = arith.constant 0.000000e+00 : f32
    %8 = vector.broadcast %cst_4 : f32 to vector<24x128xf32>
    %9 = arith.subf %8, %6 : vector<24x128xf32>
    %10 = math.exp %9 : vector<24x128xf32>
    %cst_5 = arith.constant 1.000000e+00 : f32
    %11 = vector.broadcast %cst_5 : f32 to vector<24x128xf32>
    %12 = arith.addf %11, %10 : vector<24x128xf32>
    %13 = tpu.reciprocal %12 {approx = true} : vector<24x128xf32> -> vector<24x128xf32>
    %14 = arith.mulf %6, %13 : vector<24x128xf32>
    %15 = arith.mulf %14, %7 : vector<24x128xf32>
    %16 = arith.truncf %15 : vector<24x128xf32> to vector<24x128xbf16>
    %c0_6 = arith.constant 0 : index
    %c0_7 = arith.constant 0 : index
    %17 = vector.load %arg6[%c0_6, %c0_7] : memref<24x128xf32, #tpu.memory_space<vmem>>, vector<24x128xf32>
    %c0_8 = arith.constant 0 : index
    %c0_9 = arith.constant 0 : index
    %18 = vector.load %arg4[%c0_8, %c0_9] : memref<128x128xbf16, #tpu.memory_space<vmem>>, vector<128x128xbf16>
    %cst_10 = arith.constant dense<0.000000e+00> : vector<24x128xf32>
    %19 = tpu.matmul %16, %18, %cst_10 {dimension_numbers = #tpu.dot_dimension_numbers<[1], [0], [0], [1], [0, 0, 1, 1], [], []>} : vector<24x128xbf16>, vector<128x128xbf16>, vector<24x128xf32> -> vector<24x128xf32>
    %20 = arith.addf %17, %19 : vector<24x128xf32>
    %c0_11 = arith.constant 0 : index
    %c0_12 = arith.constant 0 : index
    %21 = vector.load %arg6[%c0_11, %c0_12] : memref<24x128xf32, #tpu.memory_space<vmem>>, vector<24x128xf32>
    tpu.vector_store %arg6[%c0_11, %c0_12], %20 {strides = array<i32>} : memref<24x128xf32, #tpu.memory_space<vmem>>, vector<24x128xf32>,
    %c2_i32 = arith.constant 2 : i32
    %22 = arith.cmpi eq, %arg1, %c2_i32 : i32
    %23 = arith.extui %22 : i1 to i32
    %c0_i32_13 = arith.constant 0 : i32
    %24 = arith.cmpi ne, %23, %c0_i32_13 : i32
    scf.if %24 {
      %c0_14 = arith.constant 0 : index
      %c0_15 = arith.constant 0 : index
      %25 = vector.load %arg6[%c0_14, %c0_15] : memref<24x128xf32, #tpu.memory_space<vmem>>, vector<24x128xf32>
      %26 = arith.truncf %25 : vector<24x128xf32> to vector<24x128xbf16>
      %c0_16 = arith.constant 0 : index
      %c0_17 = arith.constant 0 : index
      %27 = vector.load %arg5[%c0_16, %c0_17] : memref<24x128xbf16, #tpu.memory_space<vmem>>, vector<24x128xbf16>
      tpu.vector_store %arg5[%c0_16, %c0_17], %26 {strides = array<i32>} : memref<24x128xbf16, #tpu.memory_space<vmem>>, vector<24x128xbf16>,
    } else {
    }
    return
  }
  func.func @transform_0(%arg0: i32, %arg1: i32) -> (i32, i32) {
    %c0_i32 = arith.constant 0 : i32
    %c0_i32_0 = arith.constant 0 : i32
    return %arg0, %c0_i32 : i32, i32
  }
  func.func @transform_1(%arg0: i32, %arg1: i32) -> (i32, i32) {
    %c0_i32 = arith.constant 0 : i32
    %c0_i32_0 = arith.constant 0 : i32
    return %c0_i32, %arg1 : i32, i32
  }
  func.func @transform_2(%arg0: i32, %arg1: i32) -> (i32, i32) {
    %c0_i32 = arith.constant 0 : i32
    %c0_i32_0 = arith.constant 0 : i32
    return %arg1, %c0_i32 : i32, i32
  }
  func.func @transform_3(%arg0: i32, %arg1: i32) -> (i32, i32) {
    %c0_i32 = arith.constant 0 : i32
    %c0_i32_0 = arith.constant 0 : i32
    return %arg0, %c0_i32 : i32, i32
  }
}

</mosaic_0001>

<llo_original>
// kernel: tpu_custom_call.1
$region0: #{tpu_custom_call.1}
  #allocation0 [shape = 'u32[]', space=smem, size = 0x4, offset = 0x4, fixed_abs, tag = 'smem constant byte address 0x4 - core index']
  #allocation1 [shape = 'u32[72,128]{1,0:T(1,128)}', space=vmem, size = 0x9000, scoped, tag = 'internal scratch']
  #allocation2 [shape = 'f32[24,128]{1,0:T(8,128)}', space=vmem, size = 0x3000, scoped, tag = 'scratch operand']
  %s0 = inlined_call_operand.hbm [shape: bf16[24,128], index: 0, kind: input, shape index: {}]
  %s1 = inlined_call_operand.hbm [shape: bf16[128,768], index: 1, kind: input, shape index: {}]
  %s2 = inlined_call_operand.hbm [shape: bf16[384,128], index: 2, kind: input, shape index: {}]
  %s3 = inlined_call_operand.hbm [shape: bf16[24,128], index: 3, kind: output, shape index: {}]
  %s4 = sld [smem:[#allocation0]]
  $region65: #{tpu_custom_call.1} parent=0
    _
  %s6 = ssub.s32 1, %s4
  %s7 = scalar_select 0, %s6, %s4
  $region1: #{tpu_custom_call.1} parent=0
    #allocation3 [shape = 'u8[6144]{0}', space=vmem, size = 0x1800, scoped, tag = 'input window, operand 0, single buffered']
    #allocation4 [shape = 's32[2]{0}', space=sflag, size = 0x8, scoped, tag = 'scoped memory for tpu_custom_call.1']
    #allocation5 [shape = 's32[2]{0}', space=sflag, size = 0x8, scoped, tag = 'scoped memory for tpu_custom_call.1']
    #allocation6 [shape = 'u8[131072]{0}', space=vmem, size = 0x20000, scoped, tag = 'input window, operand 1']
    #allocation7 [shape = 's32[2]{0}', space=sflag, size = 0x8, scoped, tag = 'scoped memory for tpu_custom_call.1']
    #allocation8 [shape = 'u8[65536]{0}', space=vmem, size = 0x10000, scoped, tag = 'input window, operand 2']
    #allocation9 [shape = 'u8[6144]{0}', space=vmem, size = 0x1800, scoped, tag = 'output window, operand 0, single buffered']
    %8 = vsyncpa [#allocation4], 0
    %9 = vsyncpa [#allocation7], 0
    %s10 = scalar_lea.sflag [#allocation7], 1
    %11 = vsyncpa %s10, 0
    %12 = vsyncpa [#allocation5], 0
    loop: start=0, step=1, limit=5
    $region2: #{tpu_custom_call.1} parent=1 // loop_pre_header
      _
    $region3: #{tpu_custom_call.1} parent=1 // loop_header
      %s14 = sphi 0, %s18
      %p15 = scmp.ge.s32.totalorder %s14, 5
      %s21 = sphi 0, %s33
      %s22 = sphi 0, %s29
      %s23 = sphi 0, %s21
      %s24 = sphi 0, %s22
      %s25 = sphi 0, %s23
      %s26 = sphi 0, %s24
      %s36 = sphi 0, %s38
      %s39 = sphi 0, %s36
      %s40 = sphi 0, %s39
      %s56 = sphi 0, %s40
      %s62 = sphi 0, %s64
      %s65 = sphi 0, %s62
      %s66 = sphi 0, %s65
      %s82 = sphi 0, %s66
      %s88 = sphi 0, %s90
      %s91 = sphi 0, %s88
      %s92 = sphi 0, %s91
      %s108 = sphi 0, %s92
      %s114 = sphi 0, %s116
      %s117 = sphi 0, %s114
      %s118 = sphi 0, %s117
      %s134 = sphi 0, %s118
    $region4: #{tpu_custom_call.1} parent=1 // loop_header_branch
      %17 = sbr.rel (%p15) target = $region8
    $region5: #{tpu_custom_call.1} parent=1 // loop_body
      %s19 = ssub.s32 %s14, 1
      %s20 = ssub.s32 %s14, 2
      %s27 = sadd.s32 1, %s22
      %p28 = scmp.ge.s32.totalorder %s27, 3
      %s29 = scalar_select %p28, 0, %s27
      %s30 = sadd.s32 1, %s21
      %s31 = scalar_select %p28, %s30, %s21
      %p32 = scmp.ge.s32.totalorder %s31, 1
      %s33 = scalar_select %p32, 0, %s31
      %s34 = ssub.s32 %s21, %s33
      %p35 = scmp.eq.s32.totalorder %s34, 0
      %s37 = sadd.s32 %s36, 1
      %s38 = scalar_select %p35, %s36, %s37
      %p41 = pneg %p35
      %p42 = scmp.eq.s32.totalorder %s14, 2
      %p43 = por %p41, %p42
      %p44 = scmp.ne.s32.totalorder %s36, %s39
      %p45 = scmp.eq.s32.totalorder %s14, 0
      %p46 = por %p44, %p45
      %p47 = scmp.ne.s32.totalorder %s36, %s39
      %p48 = scmp.eq.s32.totalorder %s19, 2
      %p49 = por %p47, %p48
      %p50 = scmp.ne.s32.totalorder %s39, %s40
      %p51 = scmp.eq.s32.totalorder %s19, 0
      %p52 = por %p50, %p51
      %p53 = scmp.ne.s32.totalorder %s39, %s40
      %p54 = scmp.eq.s32.totalorder %s20, 2
      %p55 = por %p53, %p54
      %p57 = scmp.ne.s32.totalorder %s40, %s56
      %p58 = scmp.eq.s32.totalorder %s20, 0
      %p59 = por %p57, %p58
      %s60 = ssub.s32 %s22, %s29
      %p61 = scmp.eq.s32.totalorder %s60, 0
      %s63 = sadd.s32 %s62, 1
      %s64 = scalar_select %p61, %s62, %s63
      %p67 = pneg %p61
      %p68 = scmp.eq.s32.totalorder %s14, 2
      %p69 = por %p67, %p68
      %p70 = scmp.ne.s32.totalorder %s62, %s65
      %p71 = scmp.eq.s32.totalorder %s14, 0
      %p72 = por %p70, %p71
      %p73 = scmp.ne.s32.totalorder %s62, %s65
      %p74 = scmp.eq.s32.totalorder %s19, 2
      %p75 = por %p73, %p74
      %p76 = scmp.ne.s32.totalorder %s65, %s66
      %p77 = scmp.eq.s32.totalorder %s19, 0
      %p78 = por %p76, %p77
      %p79 = scmp.ne.s32.totalorder %s65, %s66
      %p80 = scmp.eq.s32.totalorder %s20, 2
      %p81 = por %p79, %p80
      %p83 = scmp.ne.s32.totalorder %s66, %s82
      %p84 = scmp.eq.s32.totalorder %s20, 0
      %p85 = por %p83, %p84
      %s86 = ssub.s32 %s22, %s29
      %p87 = scmp.eq.s32.totalorder %s86, 0
      %s89 = sadd.s32 %s88, 1
      %s90 = scalar_select %p87, %s88, %s89
      %p93 = pneg %p87
      %p94 = scmp.eq.s32.totalorder %s14, 2
      %p95 = por %p93, %p94
      %p96 = scmp.ne.s32.totalorder %s88, %s91
      %p97 = scmp.eq.s32.totalorder %s14, 0
      %p98 = por %p96, %p97
      %p99 = scmp.ne.s32.totalorder %s88, %s91
      %p100 = scmp.eq.s32.totalorder %s19, 2
      %p101 = por %p99, %p100
      %p102 = scmp.ne.s32.totalorder %s91, %s92
      %p103 = scmp.eq.s32.totalorder %s19, 0
      %p104 = por %p102, %p103
      %p105 = scmp.ne.s32.totalorder %s91, %s92
      %p106 = scmp.eq.s32.totalorder %s20, 2
      %p107 = por %p105, %p106
      %p109 = scmp.ne.s32.totalorder %s92, %s108
      %p110 = scmp.eq.s32.totalorder %s20, 0
      %p111 = por %p109, %p110
      %s112 = ssub.s32 %s21, %s33
      %p113 = scmp.eq.s32.totalorder %s112, 0
      %s115 = sadd.s32 %s114, 1
      %s116 = scalar_select %p113, %s114, %s115
      %p119 = pneg %p113
      %p120 = scmp.eq.s32.totalorder %s14, 2
      %p121 = por %p119, %p120
      %p122 = scmp.ne.s32.totalorder %s114, %s117
      %p123 = scmp.eq.s32.totalorder %s14, 0
      %p124 = por %p122, %p123
      %p125 = scmp.ne.s32.totalorder %s114, %s117
      %p126 = scmp.eq.s32.totalorder %s19, 2
      %p127 = por %p125, %p126
      %p128 = scmp.ne.s32.totalorder %s117, %s118
      %p129 = scmp.eq.s32.totalorder %s19, 0
      %p130 = por %p128, %p129
      %p131 = scmp.ne.s32.totalorder %s117, %s118
      %p132 = scmp.eq.s32.totalorder %s20, 2
      %p133 = por %p131, %p132
      %p135 = scmp.ne.s32.totalorder %s118, %s134
      %p136 = scmp.eq.s32.totalorder %s20, 0
      %p137 = por %p135, %p136
      %p138 = scmp.le.s32.totalorder 1, %s14
      %p139 = scmp.lt.s32.totalorder %s14, 4
      %p140 = pnand %p138, %p139
      %p141 = pneg %p140
      // Predicated region
      $region9: #{tpu_custom_call.1} parent=5 // pred_check
        _
      $region10: #{tpu_custom_call.1} parent=5 // pred_check_branch
        %143 = sbr.rel (%p140) target = $region12
      $region11: #{tpu_custom_call.1} parent=5 // pred_region
        %s144 = ssub.s32 %s14, 1
        // Predicated region
        $region13: #{tpu_custom_call.1} parent=11 // pred_check
          %p145 = pneg %p52
        $region14: #{tpu_custom_call.1} parent=11 // pred_check_branch
          %147 = sbr.rel (%p145) target = $region16
        $region15: #{tpu_custom_call.1} parent=11 // pred_region
          %s148 = smul.u32 3, %s23
          %150 = vsyncadd [#allocation4], 0
          %s151 = smul.addr %s148, 4
          %s152 = scalar_lea.hbm %s0, %s151
          %s153 = sshll.u32 %s152, 4
          %s154 = int_to_ptr.hbm [resolvable:$true] %s153
          %s155 = sshll.u32 [#allocation3], 4
          %s156 = int_to_ptr.vmem [resolvable:$true] %s155
          %161 = dma.hbm_to_vmem [thread:$0]  %s154, 192, %s156, [#allocation4], 64, 64, 4
        $region16: #{tpu_custom_call.1} parent=11 // pred_fallthru
          _
      $region12: #{tpu_custom_call.1} parent=5 // pred_fallthru
        _
      %p162 = scmp.lt.s32.totalorder %s14, 3
      // Predicated region
      $region17: #{tpu_custom_call.1} parent=5 // pred_check
        %p163 = pneg %p162
      $region18: #{tpu_custom_call.1} parent=5 // pred_check_branch
        %165 = sbr.rel (%p163) target = $region20
      $region19: #{tpu_custom_call.1} parent=5 // pred_region
        // Predicated region
        $region21: #{tpu_custom_call.1} parent=19 // pred_check
          %p166 = pneg %p72
        $region22: #{tpu_custom_call.1} parent=19 // pred_check_branch
          %168 = sbr.rel (%p166) target = $region24
        $region23: #{tpu_custom_call.1} parent=19 // pred_region
          %s169 = sand.u32 %s14, 1
          %s170 = scalar_lea.sflag [#allocation7], %s169
          %s171 = sand.u32 %s62, 1
          %s172 = smul.addr %s171, 128
          %s173 = scalar_lea.vmem [#allocation6], %s172
          %s174 = smul.u32 2, %s22
          %176 = vsyncadd %s170, 0
          %s177 = smul.addr %s174, 4
          %s178 = scalar_lea.hbm %s1, %s177
          %s179 = sshll.u32 %s178, 4
          %s180 = int_to_ptr.hbm [resolvable:$true] %s179
          %s181 = sshll.u32 %s173, 4
          %s182 = int_to_ptr.vmem [resolvable:$true] %s181
          %187 = dma.hbm_to_vmem [thread:$0]  %s180, 2048, %s182, %s170, 384, 128, 8
        $region24: #{tpu_custom_call.1} parent=19 // pred_fallthru
          _
        // Predicated region
        $region25: #{tpu_custom_call.1} parent=19 // pred_check
          %p188 = pneg %p98
        $region26: #{tpu_custom_call.1} parent=19 // pred_check_branch
          %190 = sbr.rel (%p188) target = $region28
        $region27: #{tpu_custom_call.1} parent=19 // pred_region
          %s191 = sand.u32 %s14, 1
          %s192 = scalar_lea.sflag [#allocation7], %s191
          %s193 = sand.u32 %s88, 1
          %s194 = smul.addr %s193, 64
          %s195 = scalar_lea.vmem [#allocation8], %s194
          %s196 = smul.u32 16, %s22
          %198 = vsyncadd %s192, 0
          %s199 = smul.addr %s196, 4
          %s200 = scalar_lea.hbm %s2, %s199
          %s201 = sshll.u32 %s200, 4
          %s202 = int_to_ptr.hbm [resolvable:$true] %s201
          %s203 = sshll.u32 %s195, 4
          %s204 = int_to_ptr.vmem [resolvable:$true] %s203
          %209 = dma.hbm_to_vmem [thread:$0]  %s202, 1024, %s204, %s192, 64, 64, 4
        $region28: #{tpu_custom_call.1} parent=19 // pred_fallthru
          _
      $region20: #{tpu_custom_call.1} parent=5 // pred_fallthru
        _
      %p210 = scmp.le.s32.totalorder 1, %s14
      %p211 = scmp.lt.s32.totalorder %s14, 4
      %p212 = pnand %p210, %p211
      %p213 = pneg %p212
      // Predicated region
      $region29: #{tpu_custom_call.1} parent=5 // pred_check
        _
      $region30: #{tpu_custom_call.1} parent=5 // pred_check_branch
        %215 = sbr.rel (%p212) target = $region32
      $region31: #{tpu_custom_call.1} parent=5 // pred_region
        %s216 = ssub.s32 %s14, 1
        // Predicated region
        $region33: #{tpu_custom_call.1} parent=31 // pred_check
          %p217 = pneg %p52
        $region34: #{tpu_custom_call.1} parent=31 // pred_check_branch
          %219 = sbr.rel (%p217) target = $region36
        $region35: #{tpu_custom_call.1} parent=31 // pred_region
          %221 = dma.done [#allocation4], 192
        $region36: #{tpu_custom_call.1} parent=31 // pred_fallthru
          _
        %s222 = sand.u32 %s19, 1
        %s223 = scalar_lea.sflag [#allocation7], %s222
        %s224 = sand.u32 %s65, 1
        %s225 = smul.addr %s224, 128
        %s226 = scalar_lea.vmem [#allocation6], %s225
        // Predicated region
        $region37: #{tpu_custom_call.1} parent=31 // pred_check
          %p227 = pneg %p78
        $region38: #{tpu_custom_call.1} parent=31 // pred_check_branch
          %229 = sbr.rel (%p227) target = $region40
        $region39: #{tpu_custom_call.1} parent=31 // pred_region
          %231 = dma.done %s223, 2048
        $region40: #{tpu_custom_call.1} parent=31 // pred_fallthru
          _
        %s232 = sand.u32 %s19, 1
        %s233 = scalar_lea.sflag [#allocation7], %s232
        %s234 = sand.u32 %s91, 1
        %s235 = smul.addr %s234, 64
        %s236 = scalar_lea.vmem [#allocation8], %s235
        // Predicated region
        $region41: #{tpu_custom_call.1} parent=31 // pred_check
          %p237 = pneg %p104
        $region42: #{tpu_custom_call.1} parent=31 // pred_check_branch
          %239 = sbr.rel (%p237) target = $region44
        $region43: #{tpu_custom_call.1} parent=31 // pred_region
          %241 = dma.done %s233, 1024
        $region44: #{tpu_custom_call.1} parent=31 // pred_fallthru
          _
        %p242 = pneg %p52
        %p243 = pneg %p49
        %s244 = sand.u32 %s19, 1
        %s245 = scalar_lea.sflag [#allocation7], %s244
        %s246 = sand.u32 %s65, 1
        %s247 = smul.addr %s246, 128
        %s248 = scalar_lea.vmem [#allocation6], %s247
        %p249 = pneg %p78
        %p250 = pneg %p75
        %s251 = sand.u32 %s19, 1
        %s252 = scalar_lea.sflag [#allocation7], %s251
        %s253 = sand.u32 %s91, 1
        %s254 = smul.addr %s253, 64
        %s255 = scalar_lea.vmem [#allocation8], %s254
        %p256 = pneg %p104
        %p257 = pneg %p101
        %p258 = pneg %p130
        %p259 = pneg %p127
        %s260 = smul.u32 3, %s23
        %s261 = smul.u32 2, %s24
        %s262 = smul.u32 16, %s24
        %s263 = smul.u32 3, %s23
        %p264 = scmp.eq.s32.totalorder %s24, 0
        // Predicated region
        $region45: #{tpu_custom_call.1} parent=31 // pred_check
          %p265 = pneg %p264
        $region46: #{tpu_custom_call.1} parent=31 // pred_check_branch
          %267 = sbr.rel (%p265) target = $region48
        $region47: #{tpu_custom_call.1} parent=31 // pred_region
          %268 = vst [vmem:[#allocation2] sm:$0xff] 0.0
          %269 = vst [vmem:[#allocation2 + $0x8] sm:$0xff] 0.0
          %270 = vst [vmem:[#allocation2 + $0x10] sm:$0xff] 0.0
        $region48: #{tpu_custom_call.1} parent=31 // pred_fallthru
          _
        %v271 = vld [vmem:[#allocation3] sm:$0xf]
        %v272 = vld [vmem:[#allocation3 + $0x4] sm:$0xf]
        %v273 = vld [vmem:[#allocation3 + $0x8] sm:$0xf]
        %v274 = vld [vmem:[%s226] sm:$0xff]
        %v275 = vld [vmem:[%s226 + $0x8] sm:$0xff]
        %v276 = vld [vmem:[%s226 + $0x10] sm:$0xff]
        %v277 = vld [vmem:[%s226 + $0x18] sm:$0xff]
        %v278 = vld [vmem:[%s226 + $0x20] sm:$0xff]
        %v279 = vld [vmem:[%s226 + $0x28] sm:$0xff]
        %v280 = vld [vmem:[%s226 + $0x30] sm:$0xff]
        %v281 = vld [vmem:[%s226 + $0x38] sm:$0xff]
        %v282 = vld [vmem:[%s226 + $0x40] sm:$0xff]
        %v283 = vld [vmem:[%s226 + $0x48] sm:$0xff]
        %v284 = vld [vmem:[%s226 + $0x50] sm:$0xff]
        %v285 = vld [vmem:[%s226 + $0x58] sm:$0xff]
        %v286 = vld [vmem:[%s226 + $0x60] sm:$0xff]
        %v287 = vld [vmem:[%s226 + $0x68] sm:$0xff]
        %v288 = vld [vmem:[%s226 + $0x70] sm:$0xff]
        %v289 = vld [vmem:[%s226 + $0x78] sm:$0xff]
        %v293 = vunpack.c.l.b16 %v271
        %v294 = vunpack.c.l.b16 %v272
        %v295 = vunpack.c.l.b16 %v273
        %v296 = vpack.c.b16 %v294, %v293
        %v297 = vpack.c.b16 %v295, %v295
        %v316 = vunpack.c.l.b16 %v274
        %v317 = vunpack.c.h.b16 %v274
        %v318 = vunpack.c.l.b16 %v275
        %v319 = vunpack.c.h.b16 %v275
        %v320 = vunpack.c.l.b16 %v276
        %v321 = vunpack.c.h.b16 %v276
        %v322 = vunpack.c.l.b16 %v277
        %v323 = vunpack.c.h.b16 %v277
        %v324 = vunpack.c.l.b16 %v278
        %v325 = vunpack.c.h.b16 %v278
        %v326 = vunpack.c.l.b16 %v279
        %v327 = vunpack.c.h.b16 %v279
        %v328 = vunpack.c.l.b16 %v280
        %v329 = vunpack.c.h.b16 %v280
        %v330 = vunpack.c.l.b16 %v281
        %v331 = vunpack.c.h.b16 %v281
        %v332 = vunpack.c.l.b16 %v282
        %v333 = vunpack.c.h.b16 %v282
        %v334 = vunpack.c.l.b16 %v283
        %v335 = vunpack.c.h.b16 %v283
        %v336 = vunpack.c.l.b16 %v284
        %v337 = vunpack.c.h.b16 %v284
        %v338 = vunpack.c.l.b16 %v285
        %v339 = vunpack.c.h.b16 %v285
        %v340 = vunpack.c.l.b16 %v286
        %v341 = vunpack.c.h.b16 %v286
        %v342 = vunpack.c.l.b16 %v287
        %v343 = vunpack.c.h.b16 %v287
        %v344 = vunpack.c.l.b16 %v288
        %v345 = vunpack.c.h.b16 %v288
        %v346 = vunpack.c.l.b16 %v289
        %v347 = vunpack.c.h.b16 %v289
        %v348 = vpack.c.b16 %v318, %v316
        %v349 = vpack.c.b16 %v319, %v317
        %v350 = vpack.c.b16 %v322, %v320
        %v351 = vpack.c.b16 %v323, %v321
        %v352 = vpack.c.b16 %v326, %v324
        %v353 = vpack.c.b16 %v327, %v325
        %v354 = vpack.c.b16 %v330, %v328
        %v355 = vpack.c.b16 %v331, %v329
        %v356 = vpack.c.b16 %v334, %v332
        %v357 = vpack.c.b16 %v335, %v333
        %v358 = vpack.c.b16 %v338, %v336
        %v359 = vpack.c.b16 %v339, %v337
        %v360 = vpack.c.b16 %v342, %v340
        %v361 = vpack.c.b16 %v343, %v341
        %v362 = vpack.c.b16 %v346, %v344
        %v363 = vpack.c.b16 %v347, %v345
        %380 = vmatpush.bf16.msra.mxu0 %v362
        %381 = vmatpush.bf16.msra.mxu0 %v360
        %382 = vmatpush.bf16.msra.mxu0 %v358
        %383 = vmatpush.bf16.msra.mxu0 %v356
        %384 = vmatpush.bf16.msra.mxu0 %v354
        %385 = vmatpush.bf16.msra.mxu0 %v352
        %386 = vmatpush.bf16.msra.mxu0 %v350
        %387 = vmatpush.bf16.msra.mxu0 %v348
        %388 = vmatmul.bf16.gmra.mxu0 %v296
        %v389 = vpop.f32.mrf.mxu0
        %v390 = vadd.f32 0.0, %v389
        %v391 = vpop.f32.mrf.mxu0
        %v392 = vadd.f32 0.0, %v391
        %393 = vmatmul.bf16.gmra.mxu0 %v297
        %v394 = vpop.f32.mrf.mxu0
        %v395 = vadd.f32 0.0, %v394
        %v396 = vpop.f32.mrf.mxu0
        %397 = vdwg.mxu0
        %398 = vmatpush.bf16.msra.mxu0 %v363
        %399 = vmatpush.bf16.msra.mxu0 %v361
        %400 = vmatpush.bf16.msra.mxu0 %v359
        %401 = vmatpush.bf16.msra.mxu0 %v357
        %402 = vmatpush.bf16.msra.mxu0 %v355
        %403 = vmatpush.bf16.msra.mxu0 %v353
        %404 = vmatpush.bf16.msra.mxu0 %v351
        %405 = vmatpush.bf16.msra.mxu0 %v349
        %406 = vmatmul.bf16.gmra.mxu0 %v296
        %v407 = vpop.f32.mrf.mxu0
        %v408 = vadd.f32 0.0, %v407
        %v409 = vpop.f32.mrf.mxu0
        %v410 = vadd.f32 0.0, %v409
        %411 = vmatmul.bf16.gmra.mxu0 %v297
        %v412 = vpop.f32.mrf.mxu0
        %v413 = vadd.f32 0.0, %v412
        %v414 = vpop.f32.mrf.mxu0
        %415 = vdwg.mxu0
        %v416 = vsub.f32 0.0, %v390
        %v417 = vsub.f32 0.0, %v392
        %v418 = vsub.f32 0.0, %v395
        %v419 = vmul.f32 %v416, 1.442695
        %v420 = vpow.pop %v419
        %v421 = vmul.f32 %v417, 1.442695
        %v422 = vpow.pop %v421
        %v423 = vmul.f32 %v418, 1.442695
        %v424 = vpow.pop %v423
        %v425 = vadd.f32 %v420, 1.0
        %v426 = vadd.f32 %v422, 1.0
        %v427 = vadd.f32 %v424, 1.0
        %v428 = vrcp.pop %v425
        %v429 = vrcp.pop %v426
        %v430 = vrcp.pop %v427
        %v431 = vmul.f32 %v390, %v428
        %v432 = vmul.f32 %v392, %v429
        %v433 = vmul.f32 %v395, %v430
        %v434 = vmul.f32 %v431, %v408
        %v435 = vmul.f32 %v432, %v410
        %v436 = vmul.f32 %v433, %v413
        %v437 = vpack.c.bf16 %v435, %v434
        %v438 = vpack.c.bf16 %v436, %v436
        %v439 = vld [vmem:[#allocation2] sm:$0xff]
        %v440 = vld [vmem:[#allocation2 + $0x8] sm:$0xff]
        %v441 = vld [vmem:[#allocation2 + $0x10] sm:$0xff]
        %v442 = vld [vmem:[%s236] sm:$0xf]
        %v443 = vld [vmem:[%s236 + $0x4] sm:$0xf]
        %v444 = vld [vmem:[%s236 + $0x8] sm:$0xf]
        %v445 = vld [vmem:[%s236 + $0xc] sm:$0xf]
        %v446 = vld [vmem:[%s236 + $0x10] sm:$0xf]
        %v447 = vld [vmem:[%s236 + $0x14] sm:$0xf]
        %v448 = vld [vmem:[%s236 + $0x18] sm:$0xf]
        %v449 = vld [vmem:[%s236 + $0x1c] sm:$0xf]
        %v450 = vld [vmem:[%s236 + $0x20] sm:$0xf]
        %v451 = vld [vmem:[%s236 + $0x24] sm:$0xf]
        %v452 = vld [vmem:[%s236 + $0x28] sm:$0xf]
        %v453 = vld [vmem:[%s236 + $0x2c] sm:$0xf]
        %v454 = vld [vmem:[%s236 + $0x30] sm:$0xf]
        %v455 = vld [vmem:[%s236 + $0x34] sm:$0xf]
        %v456 = vld [vmem:[%s236 + $0x38] sm:$0xf]
        %v457 = vld [vmem:[%s236 + $0x3c] sm:$0xf]
        %v474 = vunpack.c.l.b16 %v442
        %v475 = vunpack.c.l.b16 %v443
        %v476 = vunpack.c.l.b16 %v444
        %v477 = vunpack.c.l.b16 %v445
        %v478 = vunpack.c.l.b16 %v446
        %v479 = vunpack.c.l.b16 %v447
        %v480 = vunpack.c.l.b16 %v448
        %v481 = vunpack.c.l.b16 %v449
        %v482 = vunpack.c.l.b16 %v450
        %v483 = vunpack.c.l.b16 %v451
        %v484 = vunpack.c.l.b16 %v452
        %v485 = vunpack.c.l.b16 %v453
        %v486 = vunpack.c.l.b16 %v454
        %v487 = vunpack.c.l.b16 %v455
        %v488 = vunpack.c.l.b16 %v456
        %v489 = vunpack.c.l.b16 %v457
        %v490 = vpack.c.b16 %v475, %v474
        %v491 = vpack.c.b16 %v477, %v476
        %v492 = vpack.c.b16 %v479, %v478
        %v493 = vpack.c.b16 %v481, %v480
        %v494 = vpack.c.b16 %v483, %v482
        %v495 = vpack.c.b16 %v485, %v484
        %v496 = vpack.c.b16 %v487, %v486
        %v497 = vpack.c.b16 %v489, %v488
        %506 = vmatpush.bf16.msra.mxu0 %v497
        %507 = vmatpush.bf16.msra.mxu0 %v496
        %508 = vmatpush.bf16.msra.mxu0 %v495
        %509 = vmatpush.bf16.msra.mxu0 %v494
        %510 = vmatpush.bf16.msra.mxu0 %v493
        %511 = vmatpush.bf16.msra.mxu0 %v492
        %512 = vmatpush.bf16.msra.mxu0 %v491
        %513 = vmatpush.bf16.msra.mxu0 %v490
        %514 = vmatmul.bf16.gmra.mxu0 %v437
        %v515 = vpop.f32.mrf.mxu0
        %v516 = vadd.f32 0.0, %v515
        %v517 = vpop.f32.mrf.mxu0
        %v518 = vadd.f32 0.0, %v517
        %519 = vmatmul.bf16.gmra.mxu0 %v438
        %v520 = vpop.f32.mrf.mxu0
        %v521 = vadd.f32 0.0, %v520
        %v522 = vpop.f32.mrf.mxu0
        %523 = vdwg.mxu0
        %v524 = vadd.f32 %v439, %v516
        %v525 = vadd.f32 %v440, %v518
        %v526 = vadd.f32 %v441, %v521
        %527 = vst [vmem:[#allocation2] sm:$0xff] %v524
        %528 = vst [vmem:[#allocation2 + $0x8] sm:$0xff] %v525
        %529 = vst [vmem:[#allocation2 + $0x10] sm:$0xff] %v526
        %p530 = scmp.eq.s32.totalorder %s24, 2
        // Predicated region
        $region49: #{tpu_custom_call.1} parent=31 // pred_check
          %p531 = pneg %p530
        $region50: #{tpu_custom_call.1} parent=31 // pred_check_branch
          %533 = sbr.rel (%p531) target = $region52
        $region51: #{tpu_custom_call.1} parent=31 // pred_region
          %v534 = vld [vmem:[#allocation2] sm:$0xff]
          %v535 = vld [vmem:[#allocation2 + $0x8] sm:$0xff]
          %v536 = vld [vmem:[#allocation2 + $0x10] sm:$0xff]
          %v537 = vpack.c.bf16 %v534, %v534
          %v538 = vpack.c.bf16 %v535, %v535
          %v539 = vpack.c.bf16 %v536, %v536
          %540 = vst [vmem:[#allocation9] sm:$0xf] %v537
          %541 = vst [vmem:[#allocation9 + $0x4] sm:$0xf] %v538
          %542 = vst [vmem:[#allocation9 + $0x8] sm:$0xf] %v539
        $region52: #{tpu_custom_call.1} parent=31 // pred_fallthru
          _
        // Predicated region
        $region53: #{tpu_custom_call.1} parent=31 // pred_check
          %p543 = pneg %p127
        $region54: #{tpu_custom_call.1} parent=31 // pred_check_branch
          %545 = sbr.rel (%p543) target = $region56
        $region55: #{tpu_custom_call.1} parent=31 // pred_region
          %s546 = smul.u32 3, %s23
          %548 = vsyncadd [#allocation5], 0
          %s549 = smul.addr %s546, 4
          %s550 = scalar_lea.hbm %s3, %s549
          %s551 = sshll.u32 [#allocation9], 4
          %s552 = int_to_ptr.vmem [resolvable:$true] %s551
          %s553 = sshll.u32 %s550, 4
          %s554 = int_to_ptr.hbm [resolvable:$true] %s553
          %559 = dma.vmem_to_hbm [thread:$0]  %s552, 192, %s554, [#allocation5], 64, 64, 4
        $region56: #{tpu_custom_call.1} parent=31 // pred_fallthru
          _
        // Predicated region
        $region57: #{tpu_custom_call.1} parent=31 // pred_check
          %p560 = pneg %p127
        $region58: #{tpu_custom_call.1} parent=31 // pred_check_branch
          %562 = sbr.rel (%p560) target = $region60
        $region59: #{tpu_custom_call.1} parent=31 // pred_region
          %564 = dma.done [#allocation5], 192
        $region60: #{tpu_custom_call.1} parent=31 // pred_fallthru
          _
      $region32: #{tpu_custom_call.1} parent=5 // pred_fallthru
        _
      %p565 = scmp.le.s32.totalorder 2, %s14
      // Predicated region
      $region61: #{tpu_custom_call.1} parent=5 // pred_check
        %p566 = pneg %p565
      $region62: #{tpu_custom_call.1} parent=5 // pred_check_branch
        %568 = sbr.rel (%p566) target = $region64
      $region63: #{tpu_custom_call.1} parent=5 // pred_region
        %s569 = ssub.s32 %s14, 2
      $region64: #{tpu_custom_call.1} parent=5 // pred_fallthru
        _
    $region6: #{tpu_custom_call.1} parent=1 // loop_footer
      %s18 = sadd.s32 1, %s14
    $region7: #{tpu_custom_call.1} parent=1 // loop_footer_branch
      %13 = sbr.rel target = $region3
    $region8: #{tpu_custom_call.1} parent=1 // loop_exit
      _
    %570 = vsyncpa [#allocation4], 1
    %s571 = scalar_lea.sflag [#allocation4], 1
    %572 = vsyncpa %s571, 1
    %573 = vsyncpa [#allocation7], 1
    %s574 = scalar_lea.sflag [#allocation7], 1
    %575 = vsyncpa %s574, 1
    %576 = vsyncpa [#allocation5], 1
    %s577 = scalar_lea.sflag [#allocation5], 1
    %578 = vsyncpa %s577, 1

</llo_original>
